<compile_context>
chip_gen: v7x
topology: tpu7x:2x2x1
jax: 0.10.0
libtpu: 0.0.40
codegen_flags: <defaults>
</compile_context>

<pallas_src>
import functools
import math

import jax
import jax.numpy as jnp
from jax import lax
from jax.experimental import pallas as pl
from jax.experimental.pallas import tpu as pltpu


def _parse_name(name: str):
    digits = "".join(s for s in name if s.isdigit())
    return int(digits), ("d" in name), ("-l" in name)


def _pool_config(name, xh, yh):
    """Mirror the PyTorch forward's kernel/stride selection logic."""
    window, dense, l1 = _parse_name(name)
    if xh > yh:
        scale = xh // yh
        kx, ky = scale * window, window
        sx = scale if dense else kx
        sy = 1 if dense else ky
    else:
        scale = yh // xh
        kx, ky = window, scale * window
        sx = 1 if dense else kx
        sy = scale if dense else ky
    return kx, sx, ky, sy, l1


def _pool_matrix(in_size, kernel, stride, dtype):
    """1D average-pooling matrix A of shape (out, in): (A @ v) pools v."""
    out_size = (in_size - kernel) // stride + 1
    rows = jnp.arange(out_size)[:, None] * stride
    cols = jnp.arange(in_size)[None, :]
    mask = (cols >= rows) & (cols < rows + kernel)
    return (mask.astype(jnp.float32) / float(kernel)).astype(dtype)


def _local_mean_kernel(x_ref, y_ref, axwt_ref, axht_ref, aywt_ref, ayht_ref,
                       out_ref, *, tb, xh, yh, l1, fuse_diff):
    cd = axwt_ref.dtype

    def pool(flat, a_wt, a_ht, h):
        # (1) width pool: one big MXU matmul with the batch folded into rows.
        w = jnp.dot(flat, a_wt, preferred_element_type=jnp.float32)  # (tb*h, qp)
        # (2) reorg [(t, h), q] -> [(t, q), h]: per-image 2-D transposes plus a
        #     row (major-dim) concat; every offset is a multiple of 8.
        tw = jnp.concatenate(
            [w[t * h:(t + 1) * h, :].T for t in range(tb)], axis=0)  # (tb*qp, h)
        # (3) height pool: second big MXU matmul.
        return jnp.dot(tw.astype(cd), a_ht,
                       preferred_element_type=jnp.float32)           # (tb*qp, p)

    if fuse_diff:
        # Equal resolution: pooling is linear -> pool (x - y) once.
        d = pool(x_ref[...].astype(cd) - y_ref[...].astype(cd),
                 axwt_ref[...], axht_ref[...], xh)
    else:
        xp = pool(x_ref[...].astype(cd), axwt_ref[...], axht_ref[...], xh)
        yp = pool(y_ref[...].astype(cd), aywt_ref[...], ayht_ref[...], yh)
        d = xp - yp

    e = jnp.abs(d) if l1 else d * d
    # Per-block partial sums: only a cross-sublane reduce here; the final
    # cross-lane / cross-block reduce is one tiny jnp.sum in the wrapper.
    out_ref[...] = jnp.sum(e, axis=0, keepdims=True)[None]          # (1, 1, p)


def _choose_tile(b, xh, xw, yh, yw, p, qp, in_itemsize):
    """Pick images-per-grid-step (TB) from a conservative VMEM budget."""
    f1 = 8 // math.gcd(xh, 8)
    f2 = 8 // math.gcd(yh, 8)
    fac = f1 * f2 // math.gcd(f1, f2)              # TB*XH, TB*YH multiples of 8
    per_img = 2 * (xh * xw + yh * yw) * in_itemsize        # double-buffered inputs
    per_img += 4 * (xh * qp + yh * qp + 3 * qp * p)        # f32 intermediates
    budget = 18 * 1024 * 1024                      # safe on v5e/v6e/v7x VMEM
    tb = max(1, budget // max(per_img, 1))
    tb = min(tb, 32)                               # keep unrolled reorg small
    tb = max(fac, (tb // fac) * fac)
    tb = min(tb, -(-b // fac) * fac)               # don't pad far past the batch
    nblk = -(-b // tb)
    return int(tb), int(nblk)


def local_mean(name: str, x: jnp.ndarray, y: jnp.ndarray) -> jnp.ndarray:
    """Pallas equivalent of LocalMean(name)(x, y) for NCHW inputs."""
    n, c, xh, xw = x.shape
    n2, c2, yh, yw = y.shape
    assert (n, c) == (n2, c2)

    kx, sx, ky, sy, l1 = _pool_config(name, xh, yh)

    # Compute dtype for the MXU operands: bf16 data stays bf16, else f32.
    cd = jnp.bfloat16 if x.dtype == jnp.bfloat16 else jnp.float32

    axh = _pool_matrix(xh, kx, sx, cd)     # (P, XH)
    axw = _pool_matrix(xw, kx, sx, cd)     # (Q, XW)
    ayh = _pool_matrix(yh, ky, sy, cd)     # (P, YH)
    ayw = _pool_matrix(yw, ky, sy, cd)     # (Q, YW)
    p, q = axh.shape[0], axw.shape[0]
    assert ayh.shape[0] == p and ayw.shape[0] == q, "pooled shapes must match"

    # Pad the pooled-width dim to a multiple of 8 with zero rows (pooled values
    # there are exactly zero on both sides, so the loss is unchanged).
    qp = -(-q // 8) * 8
    if qp != q:
        axw = jnp.pad(axw, ((0, qp - q), (0, 0)))
        ayw = jnp.pad(ayw, ((0, qp - q), (0, 0)))

    b = n * c
    in_itemsize = max(jnp.dtype(x.dtype).itemsize, jnp.dtype(y.dtype).itemsize)
    tb, nblk = _choose_tile(b, xh, xw, yh, yw, p, qp, in_itemsize)
    b_pad = nblk * tb

    xb = x.reshape(b, xh, xw)
    yb = y.reshape(b, yh, yw)
    if b_pad != b:
        # zero images pool to zero on both sides and contribute nothing.
        xb = jnp.pad(xb, ((0, b_pad - b), (0, 0), (0, 0)))
        yb = jnp.pad(yb, ((0, b_pad - b), (0, 0), (0, 0)))
    # Fold batch into rows: big 2-D slabs, native dtype (no wrapper upcast).
    xb = xb.reshape(b_pad * xh, xw)
    yb = yb.reshape(b_pad * yh, yw)

    fuse_diff = (xh, xw) == (yh, yw)   # scale == 1: pool the difference once

    flops_img = 2 * qp * (xh * xw + xh * p)
    if not fuse_diff:
        flops_img += 2 * qp * (yh * yw + yh * p)
    cost = pl.CostEstimate(
        flops=int(b_pad * flops_img),
        transcendentals=0,
        bytes_accessed=int(
            xb.size * jnp.dtype(x.dtype).itemsize
            + yb.size * jnp.dtype(y.dtype).itemsize
            + (axh.size + axw.size + ayh.size + ayw.size) * jnp.dtype(cd).itemsize
            + nblk * p * 4))

    kern = functools.partial(_local_mean_kernel, tb=tb, xh=xh, yh=yh,
                             l1=l1, fuse_diff=fuse_diff)

    out = pl.pallas_call(
        kern,
        out_shape=jax.ShapeDtypeStruct((nblk, 1, p), jnp.float32),
        grid_spec=pltpu.PrefetchScalarGridSpec(
            num_scalar_prefetch=0,
            grid=(nblk,),
            in_specs=[
                pl.BlockSpec((tb * xh, xw), lambda i: (i, 0)),
                pl.BlockSpec((tb * yh, yw), lambda i: (i, 0)),
                pl.BlockSpec((xw, qp), lambda i: (0, 0)),   # A_xw^T (constant)
                pl.BlockSpec((xh, p), lambda i: (0, 0)),    # A_xh^T (constant)
                pl.BlockSpec((yw, qp), lambda i: (0, 0)),   # A_yw^T (constant)
                pl.BlockSpec((yh, p), lambda i: (0, 0)),    # A_yh^T (constant)
            ],
            out_specs=pl.BlockSpec((1, 1, p), lambda i: (i, 0, 0)),
        ),
        compiler_params=pltpu.CompilerParams(
            dimension_semantics=("parallel",),
            vmem_limit_bytes=48 * 1024 * 1024),
        cost_estimate=cost,
    )(xb, yb, axw.T, axh.T, ayw.T, ayh.T)

    # mean over all (unpadded) pooled elements (F.mse_loss / F.l1_loss default)
    return jnp.sum(out) / float(b * p * q)


def _ref_local_mean(name: str, x: jnp.ndarray, y: jnp.ndarray) -> jnp.ndarray:
    """Pure-JAX reference (lax.reduce_window) for correctness checking."""
    _, _, xh, _ = x.shape
    _, _, yh, _ = y.shape
    kx, sx, ky, sy, l1 = _pool_config(name, xh, yh)

    def pool(t, k, s):
        acc = lax.reduce_window(t.astype(jnp.float32), 0.0, lax.add,
                                (1, 1, k, k), (1, 1, s, s), "VALID")
        return acc / float(k * k)

    xp = pool(x, kx, sx)
    yp = pool(y, ky, sy)
    d = xp - yp
    return jnp.mean(jnp.abs(d)) if l1 else jnp.mean(d * d)


if __name__ == "__main__":
    key = jax.random.PRNGKey(0)
    k1, k2, k3 = jax.random.split(key, 3)
    # x is higher-resolution than y (scale = 2), as in the intended use.
    x = jax.random.normal(k1, (2, 4, 16, 16), dtype=jnp.float32)
    y = jax.random.normal(k2, (2, 4, 8, 8), dtype=jnp.float32)
    y_same = jax.random.normal(k3, (2, 4, 16, 16), dtype=jnp.float32)

    cases = [
        ("lmean2", x, y),          # window 2, non-dense strides, MSE loss
        ("lmean2-d-l", x, y),      # window 2, dense (overlapping) pooling, L1
        ("lmean2-l", x, y_same),   # equal resolution -> fused-difference path
    ]
    for name, xa, ya in cases:
        got = jax.block_until_ready(local_mean(name, xa, ya))
        ref = jax.block_until_ready(_ref_local_mean(name, xa, ya))
        assert jnp.allclose(got, ref, rtol=5e-5, atol=1e-6), (name, got, ref)

    print("KERNEL_OK")
</pallas_src>

<mosaic_0001>
module attributes {stable_mosaic.version = 11 : i64} {
  func.func @_local_mean_kernel(%arg0: i32, %arg1: memref<128x16xf32, #tpu.memory_space<vmem>>, %arg2: memref<64x8xf32, #tpu.memory_space<vmem>>, %arg3: memref<16x8xf32, #tpu.memory_space<vmem>>, %arg4: memref<16x4xf32, #tpu.memory_space<vmem>>, %arg5: memref<8x8xf32, #tpu.memory_space<vmem>>, %arg6: memref<8x4xf32, #tpu.memory_space<vmem>>, %arg7: memref<1x1x4xf32, #tpu.memory_space<vmem>>) attributes {dimension_semantics = [#tpu.dimension_semantics<parallel>], iteration_bounds = array<i64: 1>, scalar_prefetch = 0 : i64, scratch_operands = 0 : i64, tpu.core_type = #tpu.core_type<tc>, window_params = [{transform_indices = @transform_0, window_bounds = array<i64: 128, 16>}, {transform_indices = @transform_1, window_bounds = array<i64: 64, 8>}, {pipeline_mode = #tpu.pipeline_mode<synchronous>, transform_indices = @transform_2, window_bounds = array<i64: 16, 8>}, {pipeline_mode = #tpu.pipeline_mode<synchronous>, transform_indices = @transform_3, window_bounds = array<i64: 16, 4>}, {pipeline_mode = #tpu.pipeline_mode<synchronous>, transform_indices = @transform_4, window_bounds = array<i64: 8, 8>}, {pipeline_mode = #tpu.pipeline_mode<synchronous>, transform_indices = @transform_5, window_bounds = array<i64: 8, 4>}, {transform_indices = @transform_6, window_bounds = array<i64: 1, 1, 4>}]} {
    %c0 = arith.constant 0 : index
    %c0_0 = arith.constant 0 : index
    %0 = vector.load %arg1[%c0, %c0_0] : memref<128x16xf32, #tpu.memory_space<vmem>>, vector<128x16xf32>
    %c0_1 = arith.constant 0 : index
    %c0_2 = arith.constant 0 : index
    %1 = vector.load %arg3[%c0_1, %c0_2] : memref<16x8xf32, #tpu.memory_space<vmem>>, vector<16x8xf32>
    %c0_3 = arith.constant 0 : index
    %c0_4 = arith.constant 0 : index
    %2 = vector.load %arg4[%c0_3, %c0_4] : memref<16x4xf32, #tpu.memory_space<vmem>>, vector<16x4xf32>
    %cst = arith.constant dense<0.000000e+00> : vector<128x8xf32>
    %3 = tpu.matmul %0, %1, %cst {dimension_numbers = #tpu.dot_dimension_numbers<[1], [0], [0], [1], [0, 0, 1, 1], [], []>} : vector<128x16xf32>, vector<16x8xf32>, vector<128x8xf32> -> vector<128x8xf32>
    %4 = vector.extract_strided_slice %3 {offsets = [0, 0], sizes = [16, 8], strides = [1, 1]} : vector<128x8xf32> to vector<16x8xf32>
    %5 = tpu.transpose %4, [1, 0] : vector<16x8xf32> -> vector<8x16xf32>
    %6 = vector.extract_strided_slice %3 {offsets = [16, 0], sizes = [16, 8], strides = [1, 1]} : vector<128x8xf32> to vector<16x8xf32>
    %7 = tpu.transpose %6, [1, 0] : vector<16x8xf32> -> vector<8x16xf32>
    %8 = vector.extract_strided_slice %3 {offsets = [32, 0], sizes = [16, 8], strides = [1, 1]} : vector<128x8xf32> to vector<16x8xf32>
    %9 = tpu.transpose %8, [1, 0] : vector<16x8xf32> -> vector<8x16xf32>
    %10 = vector.extract_strided_slice %3 {offsets = [48, 0], sizes = [16, 8], strides = [1, 1]} : vector<128x8xf32> to vector<16x8xf32>
    %11 = tpu.transpose %10, [1, 0] : vector<16x8xf32> -> vector<8x16xf32>
    %12 = vector.extract_strided_slice %3 {offsets = [64, 0], sizes = [16, 8], strides = [1, 1]} : vector<128x8xf32> to vector<16x8xf32>
    %13 = tpu.transpose %12, [1, 0] : vector<16x8xf32> -> vector<8x16xf32>
    %14 = vector.extract_strided_slice %3 {offsets = [80, 0], sizes = [16, 8], strides = [1, 1]} : vector<128x8xf32> to vector<16x8xf32>
    %15 = tpu.transpose %14, [1, 0] : vector<16x8xf32> -> vector<8x16xf32>
    %16 = vector.extract_strided_slice %3 {offsets = [96, 0], sizes = [16, 8], strides = [1, 1]} : vector<128x8xf32> to vector<16x8xf32>
    %17 = tpu.transpose %16, [1, 0] : vector<16x8xf32> -> vector<8x16xf32>
    %18 = vector.extract_strided_slice %3 {offsets = [112, 0], sizes = [16, 8], strides = [1, 1]} : vector<128x8xf32> to vector<16x8xf32>
    %19 = tpu.transpose %18, [1, 0] : vector<16x8xf32> -> vector<8x16xf32>
    %20 = tpu.concatenate %5, %7, %9, %11, %13, %15, %17, %19 in 0 : vector<8x16xf32>, vector<8x16xf32>, vector<8x16xf32>, vector<8x16xf32>, vector<8x16xf32>, vector<8x16xf32>, vector<8x16xf32>, vector<8x16xf32> -> vector<64x16xf32>
    %cst_5 = arith.constant dense<0.000000e+00> : vector<64x4xf32>
    %21 = tpu.matmul %20, %2, %cst_5 {dimension_numbers = #tpu.dot_dimension_numbers<[1], [0], [0], [1], [0, 0, 1, 1], [], []>} : vector<64x16xf32>, vector<16x4xf32>, vector<64x4xf32> -> vector<64x4xf32>
    %c0_6 = arith.constant 0 : index
    %c0_7 = arith.constant 0 : index
    %22 = vector.load %arg2[%c0_6, %c0_7] : memref<64x8xf32, #tpu.memory_space<vmem>>, vector<64x8xf32>
    %c0_8 = arith.constant 0 : index
    %c0_9 = arith.constant 0 : index
    %23 = vector.load %arg5[%c0_8, %c0_9] : memref<8x8xf32, #tpu.memory_space<vmem>>, vector<8x8xf32>
    %c0_10 = arith.constant 0 : index
    %c0_11 = arith.constant 0 : index
    %24 = vector.load %arg6[%c0_10, %c0_11] : memref<8x4xf32, #tpu.memory_space<vmem>>, vector<8x4xf32>
    %cst_12 = arith.constant dense<0.000000e+00> : vector<64x8xf32>
    %25 = tpu.matmul %22, %23, %cst_12 {dimension_numbers = #tpu.dot_dimension_numbers<[1], [0], [0], [1], [0, 0, 1, 1], [], []>} : vector<64x8xf32>, vector<8x8xf32>, vector<64x8xf32> -> vector<64x8xf32>
    %26 = vector.extract_strided_slice %25 {offsets = [0, 0], sizes = [8, 8], strides = [1, 1]} : vector<64x8xf32> to vector<8x8xf32>
    %27 = tpu.transpose %26, [1, 0] : vector<8x8xf32> -> vector<8x8xf32>
    %28 = vector.extract_strided_slice %25 {offsets = [8, 0], sizes = [8, 8], strides = [1, 1]} : vector<64x8xf32> to vector<8x8xf32>
    %29 = tpu.transpose %28, [1, 0] : vector<8x8xf32> -> vector<8x8xf32>
    %30 = vector.extract_strided_slice %25 {offsets = [16, 0], sizes = [8, 8], strides = [1, 1]} : vector<64x8xf32> to vector<8x8xf32>
    %31 = tpu.transpose %30, [1, 0] : vector<8x8xf32> -> vector<8x8xf32>
    %32 = vector.extract_strided_slice %25 {offsets = [24, 0], sizes = [8, 8], strides = [1, 1]} : vector<64x8xf32> to vector<8x8xf32>
    %33 = tpu.transpose %32, [1, 0] : vector<8x8xf32> -> vector<8x8xf32>
    %34 = vector.extract_strided_slice %25 {offsets = [32, 0], sizes = [8, 8], strides = [1, 1]} : vector<64x8xf32> to vector<8x8xf32>
    %35 = tpu.transpose %34, [1, 0] : vector<8x8xf32> -> vector<8x8xf32>
    %36 = vector.extract_strided_slice %25 {offsets = [40, 0], sizes = [8, 8], strides = [1, 1]} : vector<64x8xf32> to vector<8x8xf32>
    %37 = tpu.transpose %36, [1, 0] : vector<8x8xf32> -> vector<8x8xf32>
    %38 = vector.extract_strided_slice %25 {offsets = [48, 0], sizes = [8, 8], strides = [1, 1]} : vector<64x8xf32> to vector<8x8xf32>
    %39 = tpu.transpose %38, [1, 0] : vector<8x8xf32> -> vector<8x8xf32>
    %40 = vector.extract_strided_slice %25 {offsets = [56, 0], sizes = [8, 8], strides = [1, 1]} : vector<64x8xf32> to vector<8x8xf32>
    %41 = tpu.transpose %40, [1, 0] : vector<8x8xf32> -> vector<8x8xf32>
    %42 = tpu.concatenate %27, %29, %31, %33, %35, %37, %39, %41 in 0 : vector<8x8xf32>, vector<8x8xf32>, vector<8x8xf32>, vector<8x8xf32>, vector<8x8xf32>, vector<8x8xf32>, vector<8x8xf32>, vector<8x8xf32> -> vector<64x8xf32>
    %cst_13 = arith.constant dense<0.000000e+00> : vector<64x4xf32>
    %43 = tpu.matmul %42, %24, %cst_13 {dimension_numbers = #tpu.dot_dimension_numbers<[1], [0], [0], [1], [0, 0, 1, 1], [], []>} : vector<64x8xf32>, vector<8x4xf32>, vector<64x4xf32> -> vector<64x4xf32>
    %44 = arith.subf %21, %43 : vector<64x4xf32>
    %45 = arith.mulf %44, %44 : vector<64x4xf32>
    %cst_14 = arith.constant dense<0.000000e+00> : vector<4xf32>
    %46 = vector.multi_reduction <add>, %45, %cst_14 [0] : vector<64x4xf32> to vector<4xf32>
    %47 = vector.shape_cast %46 : vector<4xf32> to vector<1x4xf32>
    %48 = vector.shape_cast %47 : vector<1x4xf32> to vector<1x1x4xf32>
    %c0_15 = arith.constant 0 : index
    %c0_16 = arith.constant 0 : index
    %c0_17 = arith.constant 0 : index
    %49 = vector.load %arg7[%c0_15, %c0_16, %c0_17] : memref<1x1x4xf32, #tpu.memory_space<vmem>>, vector<1x1x4xf32>
    tpu.vector_store %arg7[%c0_15, %c0_16, %c0_17], %48 {strides = array<i32>} : memref<1x1x4xf32, #tpu.memory_space<vmem>>, vector<1x1x4xf32>,
    return
  }
  func.func @transform_0(%arg0: i32) -> (i32, i32) {
    %c0_i32 = arith.constant 0 : i32
    %c0_i32_0 = arith.constant 0 : i32
    return %arg0, %c0_i32 : i32, i32
  }
  func.func @transform_1(%arg0: i32) -> (i32, i32) {
    %c0_i32 = arith.constant 0 : i32
    %c0_i32_0 = arith.constant 0 : i32
    return %arg0, %c0_i32 : i32, i32
  }
  func.func @transform_2(%arg0: i32) -> (i32, i32) {
    %c0_i32 = arith.constant 0 : i32
    %c0_i32_0 = arith.constant 0 : i32
    %c0_i32_1 = arith.constant 0 : i32
    return %c0_i32, %c0_i32_0 : i32, i32
  }
  func.func @transform_3(%arg0: i32) -> (i32, i32) {
    %c0_i32 = arith.constant 0 : i32
    %c0_i32_0 = arith.constant 0 : i32
    %c0_i32_1 = arith.constant 0 : i32
    return %c0_i32, %c0_i32_0 : i32, i32
  }
  func.func @transform_4(%arg0: i32) -> (i32, i32) {
    %c0_i32 = arith.constant 0 : i32
    %c0_i32_0 = arith.constant 0 : i32
    %c0_i32_1 = arith.constant 0 : i32
    return %c0_i32, %c0_i32_0 : i32, i32
  }
  func.func @transform_5(%arg0: i32) -> (i32, i32) {
    %c0_i32 = arith.constant 0 : i32
    %c0_i32_0 = arith.constant 0 : i32
    %c0_i32_1 = arith.constant 0 : i32
    return %c0_i32, %c0_i32_0 : i32, i32
  }
  func.func @transform_6(%arg0: i32) -> (i32, i32, i32) {
    %c0_i32 = arith.constant 0 : i32
    %c0_i32_0 = arith.constant 0 : i32
    %c0_i32_1 = arith.constant 0 : i32
    return %arg0, %c0_i32, %c0_i32_0 : i32, i32, i32
  }
}

</mosaic_0001>

<llo_original>
// kernel: tpu_custom_call.1
$region0: #{tpu_custom_call.1}
  #allocation0 [shape = 'u32[]', space=smem, size = 0x4, offset = 0x4, fixed_abs, tag = 'smem constant byte address 0x4 - core index']
  #allocation1 [shape = 'u32[144,128]{1,0:T(1,128)}', space=vmem, size = 0x12000, scoped, tag = 'internal scratch']
  %s0 = inlined_call_operand.vmem [shape: f32[128,16], index: 0, kind: input, shape index: {}]
  %s1 = inlined_call_operand.vmem [shape: f32[64,8], index: 1, kind: input, shape index: {}]
  %s2 = inlined_call_operand.vmem [shape: f32[16,8], index: 2, kind: input, shape index: {}]
  %s3 = inlined_call_operand.vmem [shape: f32[16,4], index: 3, kind: input, shape index: {}]
  %s4 = inlined_call_operand.vmem [shape: f32[8,8], index: 4, kind: input, shape index: {}]
  %s5 = inlined_call_operand.vmem [shape: f32[8,4], index: 5, kind: input, shape index: {}]
  %s6 = inlined_call_operand.hbm [shape: f32[1,1,4], index: 6, kind: output, shape index: {}]
  %s7 = sld [smem:[#allocation0]]
  $region34: #{tpu_custom_call.1} parent=0
    _
  %s9 = ssub.s32 1, %s7
  %s10 = scalar_select 0, %s9, %s7
  $region1: #{tpu_custom_call.1} parent=0
    #allocation2 [shape = 'u8[512]{0}', space=vmem, size = 0x400, scoped, tag = 'output window, operand 0, single buffered']
    #allocation3 [shape = 's32[1]{0}', space=sflag, size = 0x4, scoped, tag = 'scoped memory for tpu_custom_call.1']
    %11 = vsyncpa [#allocation3], 0
    // Predicated region
    $region2: #{tpu_custom_call.1} parent=1 // pred_check
      _
    $region3: #{tpu_custom_call.1} parent=1 // pred_check_branch
      %13 = sbr.rel (0) target = $region5
    $region4: #{tpu_custom_call.1} parent=1 // pred_region
      _
    $region5: #{tpu_custom_call.1} parent=1 // pred_fallthru
      _
    // Predicated region
    $region6: #{tpu_custom_call.1} parent=1 // pred_check
      _
    $region7: #{tpu_custom_call.1} parent=1 // pred_check_branch
      %15 = sbr.rel (0) target = $region9
    $region8: #{tpu_custom_call.1} parent=1 // pred_region
      _
    $region9: #{tpu_custom_call.1} parent=1 // pred_fallthru
      _
    // Predicated region
    $region10: #{tpu_custom_call.1} parent=1 // pred_check
      _
    $region11: #{tpu_custom_call.1} parent=1 // pred_check_branch
      %17 = sbr.rel (0) target = $region13
    $region12: #{tpu_custom_call.1} parent=1 // pred_region
      _
    $region13: #{tpu_custom_call.1} parent=1 // pred_fallthru
      _
    // Predicated region
    $region14: #{tpu_custom_call.1} parent=1 // pred_check
      _
    $region15: #{tpu_custom_call.1} parent=1 // pred_check_branch
      %19 = sbr.rel (0) target = $region17
    $region16: #{tpu_custom_call.1} parent=1 // pred_region
      _
    $region17: #{tpu_custom_call.1} parent=1 // pred_fallthru
      _
    // Predicated region
    $region18: #{tpu_custom_call.1} parent=1 // pred_check
      _
    $region19: #{tpu_custom_call.1} parent=1 // pred_check_branch
      %21 = sbr.rel (0) target = $region21
    $region20: #{tpu_custom_call.1} parent=1 // pred_region
      _
    $region21: #{tpu_custom_call.1} parent=1 // pred_fallthru
      _
    // Predicated region
    $region22: #{tpu_custom_call.1} parent=1 // pred_check
      _
    $region23: #{tpu_custom_call.1} parent=1 // pred_check_branch
      %23 = sbr.rel (0) target = $region25
    $region24: #{tpu_custom_call.1} parent=1 // pred_region
      _
    $region25: #{tpu_custom_call.1} parent=1 // pred_fallthru
      _
    %v24 = vld [vmem:[%s0] sm:$0xff]
    %v25 = vld [vmem:[%s0 + $0x8] sm:$0xff]
    %v26 = vld [vmem:[%s0 + $0x10] sm:$0xff]
    %v27 = vld [vmem:[%s0 + $0x18] sm:$0xff]
    %v28 = vld [vmem:[%s0 + $0x20] sm:$0xff]
    %v29 = vld [vmem:[%s0 + $0x28] sm:$0xff]
    %v30 = vld [vmem:[%s0 + $0x30] sm:$0xff]
    %v31 = vld [vmem:[%s0 + $0x38] sm:$0xff]
    %v32 = vld [vmem:[%s0 + $0x40] sm:$0xff]
    %v33 = vld [vmem:[%s0 + $0x48] sm:$0xff]
    %v34 = vld [vmem:[%s0 + $0x50] sm:$0xff]
    %v35 = vld [vmem:[%s0 + $0x58] sm:$0xff]
    %v36 = vld [vmem:[%s0 + $0x60] sm:$0xff]
    %v37 = vld [vmem:[%s0 + $0x68] sm:$0xff]
    %v38 = vld [vmem:[%s0 + $0x70] sm:$0xff]
    %v39 = vld [vmem:[%s0 + $0x78] sm:$0xff]
    %v40 = vld [vmem:[%s2] sm:$0xff]
    %v41 = vld [vmem:[%s2 + $0x8] sm:$0xff]
    %v42 = vld [vmem:[%s3] sm:$0xff]
    %v43 = vld [vmem:[%s3 + $0x8] sm:$0xff]
    %vm44 = vcmask 130048
    %v46 = vsel %vm44, %v24, 0
    %v49 = vsel %vm44, %v25, 0
    %v52 = vsel %vm44, %v26, 0
    %v55 = vsel %vm44, %v27, 0
    %v58 = vsel %vm44, %v28, 0
    %v61 = vsel %vm44, %v29, 0
    %v64 = vsel %vm44, %v30, 0
    %v67 = vsel %vm44, %v31, 0
    %v70 = vsel %vm44, %v32, 0
    %v73 = vsel %vm44, %v33, 0
    %v76 = vsel %vm44, %v34, 0
    %v79 = vsel %vm44, %v35, 0
    %v82 = vsel %vm44, %v36, 0
    %v85 = vsel %vm44, %v37, 0
    %v88 = vsel %vm44, %v38, 0
    %v91 = vsel %vm44, %v39, 0
    %93 = vmatprep.subr.mxu0 0.0
    %94 = vmatpush1.msra.mxu0 %v40
    %95 = vmatprep.subr.mxu0 0.0
    %96 = vmatpush1.msra.mxu0 %v41
    %97 = vmatprep.subr.mxu0 0.0
    %98 = vmatpush1.msra.mxu0 0.0
    %99 = vmatprep.subr.mxu0 0.0
    %100 = vmatpush1.msra.mxu0 0.0
    %101 = vmatprep.subr.mxu0 0.0
    %102 = vmatpush1.msra.mxu0 0.0
    %103 = vmatprep.subr.mxu0 0.0
    %104 = vmatpush1.msra.mxu0 0.0
    %105 = vmatprep.subr.mxu0 0.0
    %106 = vmatpush1.msra.mxu0 0.0
    %107 = vmatprep.subr.mxu0 0.0
    %108 = vmatpush1.msra.mxu0 0.0
    %109 = vmatprep.subr.mxu0 0.0
    %110 = vmatpush1.msra.mxu0 0.0
    %111 = vmatprep.subr.mxu0 0.0
    %112 = vmatpush1.msra.mxu0 0.0
    %113 = vmatprep.subr.mxu0 0.0
    %114 = vmatpush1.msra.mxu0 0.0
    %115 = vmatprep.subr.mxu0 0.0
    %116 = vmatpush1.msra.mxu0 0.0
    %117 = vmatprep.subr.mxu0 0.0
    %118 = vmatpush1.msra.mxu0 0.0
    %119 = vmatprep.subr.mxu0 0.0
    %120 = vmatpush1.msra.mxu0 0.0
    %121 = vmatprep.subr.mxu0 0.0
    %122 = vmatpush1.msra.mxu0 0.0
    %123 = vmatprep.subr.mxu0 0.0
    %124 = vmatpush1.msra.mxu0 0.0
    %125 = vmatprep.subr.mxu0 0.0
    %126 = vmatpush1.msra.mxu0 0.0
    %127 = vmatprep.subr.mxu0 0.0
    %128 = vmatpush1.msra.mxu0 0.0
    %129 = vmatprep.subr.mxu0 0.0
    %130 = vmatpush1.msra.mxu0 0.0
    %131 = vmatprep.subr.mxu0 0.0
    %132 = vmatpush1.msra.mxu0 0.0
    %133 = vmatprep.subr.mxu0 0.0
    %134 = vmatpush1.msra.mxu0 0.0
    %135 = vmatprep.subr.mxu0 0.0
    %136 = vmatpush1.msra.mxu0 0.0
    %137 = vmatprep.subr.mxu0 0.0
    %138 = vmatpush1.msra.mxu0 0.0
    %139 = vmatprep.subr.mxu0 0.0
    %140 = vmatpush1.msra.mxu0 0.0
    %141 = vmatprep.subr.mxu0 0.0
    %142 = vmatpush1.msra.mxu0 0.0
    %143 = vmatprep.subr.mxu0 0.0
    %144 = vmatpush1.msra.mxu0 0.0
    %145 = vmatprep.subr.mxu0 0.0
    %146 = vmatpush1.msra.mxu0 0.0
    %147 = vmatprep.subr.mxu0 0.0
    %148 = vmatpush1.msra.mxu0 0.0
    %149 = vmatprep.subr.mxu0 0.0
    %150 = vmatpush1.msra.mxu0 0.0
    %151 = vmatprep.subr.mxu0 0.0
    %152 = vmatpush1.msra.mxu0 0.0
    %153 = vmatprep.subr.mxu0 0.0
    %154 = vmatpush1.msra.mxu0 0.0
    %155 = vmatprep.subr.mxu0 0.0
    %156 = vmatpush1.msra.mxu0 0.0
    %157 = vmatprep.mubr.f32.mxu0 0.0
    %158 = vmatmul.mubr.f32.gmra.mrb[0].mxu0 %v46
    %v159 = vpop.f32.mrb[0].mxu0
    %v160 = vadd.f32 0.0, %v159
    %v161 = vpop.f32.mrb[0].mxu0
    %162 = vmatprep.mubr.f32.mxu0 0.0
    %163 = vmatmul.mubr.f32.gmra.mrb[0].mxu0 %v49
    %v164 = vpop.f32.mrb[0].mxu0
    %v165 = vadd.f32 0.0, %v164
    %v166 = vpop.f32.mrb[0].mxu0
    %167 = vmatprep.mubr.f32.mxu0 0.0
    %168 = vmatmul.mubr.f32.gmra.mrb[0].mxu0 %v52
    %v169 = vpop.f32.mrb[0].mxu0
    %v170 = vadd.f32 0.0, %v169
    %v171 = vpop.f32.mrb[0].mxu0
    %172 = vmatprep.mubr.f32.mxu0 0.0
    %173 = vmatmul.mubr.f32.gmra.mrb[0].mxu0 %v55
    %v174 = vpop.f32.mrb[0].mxu0
    %v175 = vadd.f32 0.0, %v174
    %v176 = vpop.f32.mrb[0].mxu0
    %177 = vmatprep.mubr.f32.mxu0 0.0
    %178 = vmatmul.mubr.f32.gmra.mrb[0].mxu0 %v58
    %v179 = vpop.f32.mrb[0].mxu0
    %v180 = vadd.f32 0.0, %v179
    %v181 = vpop.f32.mrb[0].mxu0
    %182 = vmatprep.mubr.f32.mxu0 0.0
    %183 = vmatmul.mubr.f32.gmra.mrb[0].mxu0 %v61
    %v184 = vpop.f32.mrb[0].mxu0
    %v185 = vadd.f32 0.0, %v184
    %v186 = vpop.f32.mrb[0].mxu0
    %187 = vmatprep.mubr.f32.mxu0 0.0
    %188 = vmatmul.mubr.f32.gmra.mrb[0].mxu0 %v64
    %v189 = vpop.f32.mrb[0].mxu0
    %v190 = vadd.f32 0.0, %v189
    %v191 = vpop.f32.mrb[0].mxu0
    %192 = vmatprep.mubr.f32.mxu0 0.0
    %193 = vmatmul.mubr.f32.gmra.mrb[0].mxu0 %v67
    %v194 = vpop.f32.mrb[0].mxu0
    %v195 = vadd.f32 0.0, %v194
    %v196 = vpop.f32.mrb[0].mxu0
    %197 = vmatprep.mubr.f32.mxu0 0.0
    %198 = vmatmul.mubr.f32.gmra.mrb[0].mxu0 %v70
    %v199 = vpop.f32.mrb[0].mxu0
    %v200 = vadd.f32 0.0, %v199
    %v201 = vpop.f32.mrb[0].mxu0
    %202 = vmatprep.mubr.f32.mxu0 0.0
    %203 = vmatmul.mubr.f32.gmra.mrb[0].mxu0 %v73
    %v204 = vpop.f32.mrb[0].mxu0
    %v205 = vadd.f32 0.0, %v204
    %v206 = vpop.f32.mrb[0].mxu0
    %207 = vmatprep.mubr.f32.mxu0 0.0
    %208 = vmatmul.mubr.f32.gmra.mrb[0].mxu0 %v76
    %v209 = vpop.f32.mrb[0].mxu0
    %v210 = vadd.f32 0.0, %v209
    %v211 = vpop.f32.mrb[0].mxu0
    %212 = vmatprep.mubr.f32.mxu0 0.0
    %213 = vmatmul.mubr.f32.gmra.mrb[0].mxu0 %v79
    %v214 = vpop.f32.mrb[0].mxu0
    %v215 = vadd.f32 0.0, %v214
    %v216 = vpop.f32.mrb[0].mxu0
    %217 = vmatprep.mubr.f32.mxu0 0.0
    %218 = vmatmul.mubr.f32.gmra.mrb[0].mxu0 %v82
    %v219 = vpop.f32.mrb[0].mxu0
    %v220 = vadd.f32 0.0, %v219
    %v221 = vpop.f32.mrb[0].mxu0
    %222 = vmatprep.mubr.f32.mxu0 0.0
    %223 = vmatmul.mubr.f32.gmra.mrb[0].mxu0 %v85
    %v224 = vpop.f32.mrb[0].mxu0
    %v225 = vadd.f32 0.0, %v224
    %v226 = vpop.f32.mrb[0].mxu0
    %227 = vmatprep.mubr.f32.mxu0 0.0
    %228 = vmatmul.mubr.f32.gmra.mrb[0].mxu0 %v88
    %v229 = vpop.f32.mrb[0].mxu0
    %v230 = vadd.f32 0.0, %v229
    %v231 = vpop.f32.mrb[0].mxu0
    %232 = vmatprep.mubr.f32.mxu0 0.0
    %233 = vmatmul.mubr.f32.gmra.mrb[0].mxu0 %v91
    %v234 = vpop.f32.mrb[0].mxu0
    %v235 = vadd.f32 0.0, %v234
    %v236 = vpop.f32.mrb[0].mxu0
    %237 = vdwg.mxu0
    %238 = vxpose.xlu0.b32.start [1/16] %v160, 128
    %239 = vxpose.xlu0.b32.cont [2/16] %v165, 128
    %240 = vxpose.xlu0.b32.cont [3/16] 0.0, 128
    %241 = vxpose.xlu0.b32.cont [4/16] 0.0, 128
    %242 = vxpose.xlu0.b32.cont [5/16] 0.0, 128
    %243 = vxpose.xlu0.b32.cont [6/16] 0.0, 128
    %244 = vxpose.xlu0.b32.cont [7/16] 0.0, 128
    %245 = vxpose.xlu0.b32.cont [8/16] 0.0, 128
    %246 = vxpose.xlu0.b32.cont [9/16] 0.0, 128
    %247 = vxpose.xlu0.b32.cont [10/16] 0.0, 128
    %248 = vxpose.xlu0.b32.cont [11/16] 0.0, 128
    %249 = vxpose.xlu0.b32.cont [12/16] 0.0, 128
    %250 = vxpose.xlu0.b32.cont [13/16] 0.0, 128
    %251 = vxpose.xlu0.b32.cont [14/16] 0.0, 128
    %252 = vxpose.xlu0.b32.cont [15/16] 0.0, 128
    %253 = vxpose.xlu0.b32.end [16/16] 0.0, 128
    %v254 = vpop.trf.xlu0
    %v255 = vpop.trf.xlu0
    %v256 = vpop.trf.xlu0
    %v257 = vpop.trf.xlu0
    %v258 = vpop.trf.xlu0
    %v259 = vpop.trf.xlu0
    %v260 = vpop.trf.xlu0
    %v261 = vpop.trf.xlu0
    %v262 = vpop.trf.xlu0
    %v263 = vpop.trf.xlu0
    %v264 = vpop.trf.xlu0
    %v265 = vpop.trf.xlu0
    %v266 = vpop.trf.xlu0
    %v267 = vpop.trf.xlu0
    %v268 = vpop.trf.xlu0
    %v269 = vpop.trf.xlu0
    %270 = vxpose.xlu0.b32.start [1/16] %v170, 128
    %271 = vxpose.xlu0.b32.cont [2/16] %v175, 128
    %272 = vxpose.xlu0.b32.cont [3/16] 0.0, 128
    %273 = vxpose.xlu0.b32.cont [4/16] 0.0, 128
    %274 = vxpose.xlu0.b32.cont [5/16] 0.0, 128
    %275 = vxpose.xlu0.b32.cont [6/16] 0.0, 128
    %276 = vxpose.xlu0.b32.cont [7/16] 0.0, 128
    %277 = vxpose.xlu0.b32.cont [8/16] 0.0, 128
    %278 = vxpose.xlu0.b32.cont [9/16] 0.0, 128
    %279 = vxpose.xlu0.b32.cont [10/16] 0.0, 128
    %280 = vxpose.xlu0.b32.cont [11/16] 0.0, 128
    %281 = vxpose.xlu0.b32.cont [12/16] 0.0, 128
    %282 = vxpose.xlu0.b32.cont [13/16] 0.0, 128
    %283 = vxpose.xlu0.b32.cont [14/16] 0.0, 128
    %284 = vxpose.xlu0.b32.cont [15/16] 0.0, 128
    %285 = vxpose.xlu0.b32.end [16/16] 0.0, 128
    %v286 = vpop.trf.xlu0
    %v287 = vpop.trf.xlu0
    %v288 = vpop.trf.xlu0
    %v289 = vpop.trf.xlu0
    %v290 = vpop.trf.xlu0
    %v291 = vpop.trf.xlu0
    %v292 = vpop.trf.xlu0
    %v293 = vpop.trf.xlu0
    %v294 = vpop.trf.xlu0
    %v295 = vpop.trf.xlu0
    %v296 = vpop.trf.xlu0
    %v297 = vpop.trf.xlu0
    %v298 = vpop.trf.xlu0
    %v299 = vpop.trf.xlu0
    %v300 = vpop.trf.xlu0
    %v301 = vpop.trf.xlu0
    %302 = vxpose.xlu0.b32.start [1/16] %v180, 128
    %303 = vxpose.xlu0.b32.cont [2/16] %v185, 128
    %304 = vxpose.xlu0.b32.cont [3/16] 0.0, 128
    %305 = vxpose.xlu0.b32.cont [4/16] 0.0, 128
    %306 = vxpose.xlu0.b32.cont [5/16] 0.0, 128
    %307 = vxpose.xlu0.b32.cont [6/16] 0.0, 128
    %308 = vxpose.xlu0.b32.cont [7/16] 0.0, 128
    %309 = vxpose.xlu0.b32.cont [8/16] 0.0, 128
    %310 = vxpose.xlu0.b32.cont [9/16] 0.0, 128
    %311 = vxpose.xlu0.b32.cont [10/16] 0.0, 128
    %312 = vxpose.xlu0.b32.cont [11/16] 0.0, 128
    %313 = vxpose.xlu0.b32.cont [12/16] 0.0, 128
    %314 = vxpose.xlu0.b32.cont [13/16] 0.0, 128
    %315 = vxpose.xlu0.b32.cont [14/16] 0.0, 128
    %316 = vxpose.xlu0.b32.cont [15/16] 0.0, 128
    %317 = vxpose.xlu0.b32.end [16/16] 0.0, 128
    %v318 = vpop.trf.xlu0
    %v319 = vpop.trf.xlu0
    %v320 = vpop.trf.xlu0
    %v321 = vpop.trf.xlu0
    %v322 = vpop.trf.xlu0
    %v323 = vpop.trf.xlu0
    %v324 = vpop.trf.xlu0
    %v325 = vpop.trf.xlu0
    %v326 = vpop.trf.xlu0
    %v327 = vpop.trf.xlu0
    %v328 = vpop.trf.xlu0
    %v329 = vpop.trf.xlu0
    %v330 = vpop.trf.xlu0
    %v331 = vpop.trf.xlu0
    %v332 = vpop.trf.xlu0
    %v333 = vpop.trf.xlu0
    %334 = vxpose.xlu0.b32.start [1/16] %v190, 128
    %335 = vxpose.xlu0.b32.cont [2/16] %v195, 128
    %336 = vxpose.xlu0.b32.cont [3/16] 0.0, 128
    %337 = vxpose.xlu0.b32.cont [4/16] 0.0, 128
    %338 = vxpose.xlu0.b32.cont [5/16] 0.0, 128
    %339 = vxpose.xlu0.b32.cont [6/16] 0.0, 128
    %340 = vxpose.xlu0.b32.cont [7/16] 0.0, 128
    %341 = vxpose.xlu0.b32.cont [8/16] 0.0, 128
    %342 = vxpose.xlu0.b32.cont [9/16] 0.0, 128
    %343 = vxpose.xlu0.b32.cont [10/16] 0.0, 128
    %344 = vxpose.xlu0.b32.cont [11/16] 0.0, 128
    %345 = vxpose.xlu0.b32.cont [12/16] 0.0, 128
    %346 = vxpose.xlu0.b32.cont [13/16] 0.0, 128
    %347 = vxpose.xlu0.b32.cont [14/16] 0.0, 128
    %348 = vxpose.xlu0.b32.cont [15/16] 0.0, 128
    %349 = vxpose.xlu0.b32.end [16/16] 0.0, 128
    %v350 = vpop.trf.xlu0
    %v351 = vpop.trf.xlu0
    %v352 = vpop.trf.xlu0
    %v353 = vpop.trf.xlu0
    %v354 = vpop.trf.xlu0
    %v355 = vpop.trf.xlu0
    %v356 = vpop.trf.xlu0
    %v357 = vpop.trf.xlu0
    %v358 = vpop.trf.xlu0
    %v359 = vpop.trf.xlu0
    %v360 = vpop.trf.xlu0
    %v361 = vpop.trf.xlu0
    %v362 = vpop.trf.xlu0
    %v363 = vpop.trf.xlu0
    %v364 = vpop.trf.xlu0
    %v365 = vpop.trf.xlu0
    %366 = vxpose.xlu0.b32.start [1/16] %v200, 128
    %367 = vxpose.xlu0.b32.cont [2/16] %v205, 128
    %368 = vxpose.xlu0.b32.cont [3/16] 0.0, 128
    %369 = vxpose.xlu0.b32.cont [4/16] 0.0, 128
    %370 = vxpose.xlu0.b32.cont [5/16] 0.0, 128
    %371 = vxpose.xlu0.b32.cont [6/16] 0.0, 128
    %372 = vxpose.xlu0.b32.cont [7/16] 0.0, 128
    %373 = vxpose.xlu0.b32.cont [8/16] 0.0, 128
    %374 = vxpose.xlu0.b32.cont [9/16] 0.0, 128
    %375 = vxpose.xlu0.b32.cont [10/16] 0.0, 128
    %376 = vxpose.xlu0.b32.cont [11/16] 0.0, 128
    %377 = vxpose.xlu0.b32.cont [12/16] 0.0, 128
    %378 = vxpose.xlu0.b32.cont [13/16] 0.0, 128
    %379 = vxpose.xlu0.b32.cont [14/16] 0.0, 128
    %380 = vxpose.xlu0.b32.cont [15/16] 0.0, 128
    %381 = vxpose.xlu0.b32.end [16/16] 0.0, 128
    %v382 = vpop.trf.xlu0
    %v383 = vpop.trf.xlu0
    %v384 = vpop.trf.xlu0
    %v385 = vpop.trf.xlu0
    %v386 = vpop.trf.xlu0
    %v387 = vpop.trf.xlu0
    %v388 = vpop.trf.xlu0
    %v389 = vpop.trf.xlu0
    %v390 = vpop.trf.xlu0
    %v391 = vpop.trf.xlu0
    %v392 = vpop.trf.xlu0
    %v393 = vpop.trf.xlu0
    %v394 = vpop.trf.xlu0
    %v395 = vpop.trf.xlu0
    %v396 = vpop.trf.xlu0
    %v397 = vpop.trf.xlu0
    %398 = vxpose.xlu0.b32.start [1/16] %v210, 128
    %399 = vxpose.xlu0.b32.cont [2/16] %v215, 128
    %400 = vxpose.xlu0.b32.cont [3/16] 0.0, 128
    %401 = vxpose.xlu0.b32.cont [4/16] 0.0, 128
    %402 = vxpose.xlu0.b32.cont [5/16] 0.0, 128
    %403 = vxpose.xlu0.b32.cont [6/16] 0.0, 128
    %404 = vxpose.xlu0.b32.cont [7/16] 0.0, 128
    %405 = vxpose.xlu0.b32.cont [8/16] 0.0, 128
    %406 = vxpose.xlu0.b32.cont [9/16] 0.0, 128
    %407 = vxpose.xlu0.b32.cont [10/16] 0.0, 128
    %408 = vxpose.xlu0.b32.cont [11/16] 0.0, 128
    %409 = vxpose.xlu0.b32.cont [12/16] 0.0, 128
    %410 = vxpose.xlu0.b32.cont [13/16] 0.0, 128
    %411 = vxpose.xlu0.b32.cont [14/16] 0.0, 128
    %412 = vxpose.xlu0.b32.cont [15/16] 0.0, 128
    %413 = vxpose.xlu0.b32.end [16/16] 0.0, 128
    %v414 = vpop.trf.xlu0
    %v415 = vpop.trf.xlu0
    %v416 = vpop.trf.xlu0
    %v417 = vpop.trf.xlu0
    %v418 = vpop.trf.xlu0
    %v419 = vpop.trf.xlu0
    %v420 = vpop.trf.xlu0
    %v421 = vpop.trf.xlu0
    %v422 = vpop.trf.xlu0
    %v423 = vpop.trf.xlu0
    %v424 = vpop.trf.xlu0
    %v425 = vpop.trf.xlu0
    %v426 = vpop.trf.xlu0
    %v427 = vpop.trf.xlu0
    %v428 = vpop.trf.xlu0
    %v429 = vpop.trf.xlu0
    %430 = vxpose.xlu0.b32.start [1/16] %v220, 128
    %431 = vxpose.xlu0.b32.cont [2/16] %v225, 128
    %432 = vxpose.xlu0.b32.cont [3/16] 0.0, 128
    %433 = vxpose.xlu0.b32.cont [4/16] 0.0, 128
    %434 = vxpose.xlu0.b32.cont [5/16] 0.0, 128
    %435 = vxpose.xlu0.b32.cont [6/16] 0.0, 128
    %436 = vxpose.xlu0.b32.cont [7/16] 0.0, 128
    %437 = vxpose.xlu0.b32.cont [8/16] 0.0, 128
    %438 = vxpose.xlu0.b32.cont [9/16] 0.0, 128
    %439 = vxpose.xlu0.b32.cont [10/16] 0.0, 128
    %440 = vxpose.xlu0.b32.cont [11/16] 0.0, 128
    %441 = vxpose.xlu0.b32.cont [12/16] 0.0, 128
    %442 = vxpose.xlu0.b32.cont [13/16] 0.0, 128
    %443 = vxpose.xlu0.b32.cont [14/16] 0.0, 128
    %444 = vxpose.xlu0.b32.cont [15/16] 0.0, 128
    %445 = vxpose.xlu0.b32.end [16/16] 0.0, 128
    %v446 = vpop.trf.xlu0
    %v447 = vpop.trf.xlu0
    %v448 = vpop.trf.xlu0
    %v449 = vpop.trf.xlu0
    %v450 = vpop.trf.xlu0
    %v451 = vpop.trf.xlu0
    %v452 = vpop.trf.xlu0
    %v453 = vpop.trf.xlu0
    %v454 = vpop.trf.xlu0
    %v455 = vpop.trf.xlu0
    %v456 = vpop.trf.xlu0
    %v457 = vpop.trf.xlu0
    %v458 = vpop.trf.xlu0
    %v459 = vpop.trf.xlu0
    %v460 = vpop.trf.xlu0
    %v461 = vpop.trf.xlu0
    %462 = vxpose.xlu0.b32.start [1/16] %v230, 128
    %463 = vxpose.xlu0.b32.cont [2/16] %v235, 128
    %464 = vxpose.xlu0.b32.cont [3/16] 0.0, 128
    %465 = vxpose.xlu0.b32.cont [4/16] 0.0, 128
    %466 = vxpose.xlu0.b32.cont [5/16] 0.0, 128
    %467 = vxpose.xlu0.b32.cont [6/16] 0.0, 128
    %468 = vxpose.xlu0.b32.cont [7/16] 0.0, 128
    %469 = vxpose.xlu0.b32.cont [8/16] 0.0, 128
    %470 = vxpose.xlu0.b32.cont [9/16] 0.0, 128
    %471 = vxpose.xlu0.b32.cont [10/16] 0.0, 128
    %472 = vxpose.xlu0.b32.cont [11/16] 0.0, 128
    %473 = vxpose.xlu0.b32.cont [12/16] 0.0, 128
    %474 = vxpose.xlu0.b32.cont [13/16] 0.0, 128
    %475 = vxpose.xlu0.b32.cont [14/16] 0.0, 128
    %476 = vxpose.xlu0.b32.cont [15/16] 0.0, 128
    %477 = vxpose.xlu0.b32.end [16/16] 0.0, 128
    %v478 = vpop.trf.xlu0
    %v479 = vpop.trf.xlu0
    %v480 = vpop.trf.xlu0
    %v481 = vpop.trf.xlu0
    %v482 = vpop.trf.xlu0
    %v483 = vpop.trf.xlu0
    %v484 = vpop.trf.xlu0
    %v485 = vpop.trf.xlu0
    %v486 = vpop.trf.xlu0
    %v487 = vpop.trf.xlu0
    %v488 = vpop.trf.xlu0
    %v489 = vpop.trf.xlu0
    %v490 = vpop.trf.xlu0
    %v491 = vpop.trf.xlu0
    %v492 = vpop.trf.xlu0
    %v493 = vpop.trf.xlu0
    %v495 = vsel %vm44, %v254, 0
    %v498 = vsel %vm44, %v286, 0
    %v501 = vsel %vm44, %v318, 0
    %v504 = vsel %vm44, %v350, 0
    %v507 = vsel %vm44, %v382, 0
    %v510 = vsel %vm44, %v414, 0
    %v513 = vsel %vm44, %v446, 0
    %v516 = vsel %vm44, %v478, 0
    %518 = vmatprep.subr.mxu0 0.0
    %519 = vmatpush1.msra.mxu0 %v42
    %520 = vmatprep.subr.mxu0 0.0
    %521 = vmatpush1.msra.mxu0 %v43
    %522 = vmatprep.subr.mxu0 0.0
    %523 = vmatpush1.msra.mxu0 0.0
    %524 = vmatprep.subr.mxu0 0.0
    %525 = vmatpush1.msra.mxu0 0.0
    %526 = vmatprep.subr.mxu0 0.0
    %527 = vmatpush1.msra.mxu0 0.0
    %528 = vmatprep.subr.mxu0 0.0
    %529 = vmatpush1.msra.mxu0 0.0
    %530 = vmatprep.subr.mxu0 0.0
    %531 = vmatpush1.msra.mxu0 0.0
    %532 = vmatprep.subr.mxu0 0.0
    %533 = vmatpush1.msra.mxu0 0.0
    %534 = vmatprep.subr.mxu0 0.0
    %535 = vmatpush1.msra.mxu0 0.0
    %536 = vmatprep.subr.mxu0 0.0
    %537 = vmatpush1.msra.mxu0 0.0
    %538 = vmatprep.subr.mxu0 0.0
    %539 = vmatpush1.msra.mxu0 0.0
    %540 = vmatprep.subr.mxu0 0.0
    %541 = vmatpush1.msra.mxu0 0.0
    %542 = vmatprep.subr.mxu0 0.0
    %543 = vmatpush1.msra.mxu0 0.0
    %544 = vmatprep.subr.mxu0 0.0
    %545 = vmatpush1.msra.mxu0 0.0
    %546 = vmatprep.subr.mxu0 0.0
    %547 = vmatpush1.msra.mxu0 0.0
    %548 = vmatprep.subr.mxu0 0.0
    %549 = vmatpush1.msra.mxu0 0.0
    %550 = vmatprep.subr.mxu0 0.0
    %551 = vmatpush1.msra.mxu0 0.0
    %552 = vmatprep.subr.mxu0 0.0
    %553 = vmatpush1.msra.mxu0 0.0
    %554 = vmatprep.subr.mxu0 0.0
    %555 = vmatpush1.msra.mxu0 0.0
    %556 = vmatprep.subr.mxu0 0.0
    %557 = vmatpush1.msra.mxu0 0.0
    %558 = vmatprep.subr.mxu0 0.0
    %559 = vmatpush1.msra.mxu0 0.0
    %560 = vmatprep.subr.mxu0 0.0
    %561 = vmatpush1.msra.mxu0 0.0
    %562 = vmatprep.subr.mxu0 0.0
    %563 = vmatpush1.msra.mxu0 0.0
    %564 = vmatprep.subr.mxu0 0.0
    %565 = vmatpush1.msra.mxu0 0.0
    %566 = vmatprep.subr.mxu0 0.0
    %567 = vmatpush1.msra.mxu0 0.0
    %568 = vmatprep.subr.mxu0 0.0
    %569 = vmatpush1.msra.mxu0 0.0
    %570 = vmatprep.subr.mxu0 0.0
    %571 = vmatpush1.msra.mxu0 0.0
    %572 = vmatprep.subr.mxu0 0.0
    %573 = vmatpush1.msra.mxu0 0.0
    %574 = vmatprep.subr.mxu0 0.0
    %575 = vmatpush1.msra.mxu0 0.0
    %576 = vmatprep.subr.mxu0 0.0
    %577 = vmatpush1.msra.mxu0 0.0
    %578 = vmatprep.subr.mxu0 0.0
    %579 = vmatpush1.msra.mxu0 0.0
    %580 = vmatprep.subr.mxu0 0.0
    %581 = vmatpush1.msra.mxu0 0.0
    %582 = vmatprep.mubr.f32.mxu0 0.0
    %583 = vmatmul.mubr.f32.gmra.mrb[0].mxu0 %v495
    %v584 = vpop.f32.mrb[0].mxu0
    %v585 = vadd.f32 0.0, %v584
    %v586 = vpop.f32.mrb[0].mxu0
    %587 = vmatprep.mubr.f32.mxu0 0.0
    %588 = vmatmul.mubr.f32.gmra.mrb[0].mxu0 %v498
    %v589 = vpop.f32.mrb[0].mxu0
    %v590 = vadd.f32 0.0, %v589
    %v591 = vpop.f32.mrb[0].mxu0
    %592 = vmatprep.mubr.f32.mxu0 0.0
    %593 = vmatmul.mubr.f32.gmra.mrb[0].mxu0 %v501
    %v594 = vpop.f32.mrb[0].mxu0
    %v595 = vadd.f32 0.0, %v594
    %v596 = vpop.f32.mrb[0].mxu0
    %597 = vmatprep.mubr.f32.mxu0 0.0
    %598 = vmatmul.mubr.f32.gmra.mrb[0].mxu0 %v504
    %v599 = vpop.f32.mrb[0].mxu0
    %v600 = vadd.f32 0.0, %v599
    %v601 = vpop.f32.mrb[0].mxu0
    %602 = vmatprep.mubr.f32.mxu0 0.0
    %603 = vmatmul.mubr.f32.gmra.mrb[0].mxu0 %v507
    %v604 = vpop.f32.mrb[0].mxu0
    %v605 = vadd.f32 0.0, %v604
    %v606 = vpop.f32.mrb[0].mxu0
    %607 = vmatprep.mubr.f32.mxu0 0.0
    %608 = vmatmul.mubr.f32.gmra.mrb[0].mxu0 %v510
    %v609 = vpop.f32.mrb[0].mxu0
    %v610 = vadd.f32 0.0, %v609
    %v611 = vpop.f32.mrb[0].mxu0
    %612 = vmatprep.mubr.f32.mxu0 0.0
    %613 = vmatmul.mubr.f32.gmra.mrb[0].mxu0 %v513
    %v614 = vpop.f32.mrb[0].mxu0
    %v615 = vadd.f32 0.0, %v614
    %v616 = vpop.f32.mrb[0].mxu0
    %617 = vmatprep.mubr.f32.mxu0 0.0
    %618 = vmatmul.mubr.f32.gmra.mrb[0].mxu0 %v516
    %v619 = vpop.f32.mrb[0].mxu0
    %v620 = vadd.f32 0.0, %v619
    %v621 = vpop.f32.mrb[0].mxu0
    %622 = vdwg.mxu0
    %v623 = vld [vmem:[%s1] sm:$0xff]
    %v624 = vld [vmem:[%s1 + $0x8] sm:$0xff]
    %v625 = vld [vmem:[%s1 + $0x10] sm:$0xff]
    %v626 = vld [vmem:[%s1 + $0x18] sm:$0xff]
    %v627 = vld [vmem:[%s1 + $0x20] sm:$0xff]
    %v628 = vld [vmem:[%s1 + $0x28] sm:$0xff]
    %v629 = vld [vmem:[%s1 + $0x30] sm:$0xff]
    %v630 = vld [vmem:[%s1 + $0x38] sm:$0xff]
    %v631 = vld [vmem:[%s4] sm:$0xff]
    %v632 = vld [vmem:[%s5] sm:$0xff]
    %vm633 = vcmask 64512
    %v635 = vsel %vm633, %v623, 0
    %v638 = vsel %vm633, %v624, 0
    %v641 = vsel %vm633, %v625, 0
    %v644 = vsel %vm633, %v626, 0
    %v647 = vsel %vm633, %v627, 0
    %v650 = vsel %vm633, %v628, 0
    %v653 = vsel %vm633, %v629, 0
    %v656 = vsel %vm633, %v630, 0
    %658 = vmatprep.subr.mxu0 0.0
    %659 = vmatpush1.msra.mxu0 %v631
    %660 = vmatprep.subr.mxu0 0.0
    %661 = vmatpush1.msra.mxu0 0.0
    %662 = vmatprep.subr.mxu0 0.0
    %663 = vmatpush1.msra.mxu0 0.0
    %664 = vmatprep.subr.mxu0 0.0
    %665 = vmatpush1.msra.mxu0 0.0
    %666 = vmatprep.subr.mxu0 0.0
    %667 = vmatpush1.msra.mxu0 0.0
    %668 = vmatprep.subr.mxu0 0.0
    %669 = vmatpush1.msra.mxu0 0.0
    %670 = vmatprep.subr.mxu0 0.0
    %671 = vmatpush1.msra.mxu0 0.0
    %672 = vmatprep.subr.mxu0 0.0
    %673 = vmatpush1.msra.mxu0 0.0
    %674 = vmatprep.subr.mxu0 0.0
    %675 = vmatpush1.msra.mxu0 0.0
    %676 = vmatprep.subr.mxu0 0.0
    %677 = vmatpush1.msra.mxu0 0.0
    %678 = vmatprep.subr.mxu0 0.0
    %679 = vmatpush1.msra.mxu0 0.0
    %680 = vmatprep.subr.mxu0 0.0
    %681 = vmatpush1.msra.mxu0 0.0
    %682 = vmatprep.subr.mxu0 0.0
    %683 = vmatpush1.msra.mxu0 0.0
    %684 = vmatprep.subr.mxu0 0.0
    %685 = vmatpush1.msra.mxu0 0.0
    %686 = vmatprep.subr.mxu0 0.0
    %687 = vmatpush1.msra.mxu0 0.0
    %688 = vmatprep.subr.mxu0 0.0
    %689 = vmatpush1.msra.mxu0 0.0
    %690 = vmatprep.subr.mxu0 0.0
    %691 = vmatpush1.msra.mxu0 0.0
    %692 = vmatprep.subr.mxu0 0.0
    %693 = vmatpush1.msra.mxu0 0.0
    %694 = vmatprep.subr.mxu0 0.0
    %695 = vmatpush1.msra.mxu0 0.0
    %696 = vmatprep.subr.mxu0 0.0
    %697 = vmatpush1.msra.mxu0 0.0
    %698 = vmatprep.subr.mxu0 0.0
    %699 = vmatpush1.msra.mxu0 0.0
    %700 = vmatprep.subr.mxu0 0.0
    %701 = vmatpush1.msra.mxu0 0.0
    %702 = vmatprep.subr.mxu0 0.0
    %703 = vmatpush1.msra.mxu0 0.0
    %704 = vmatprep.subr.mxu0 0.0
    %705 = vmatpush1.msra.mxu0 0.0
    %706 = vmatprep.subr.mxu0 0.0
    %707 = vmatpush1.msra.mxu0 0.0
    %708 = vmatprep.subr.mxu0 0.0
    %709 = vmatpush1.msra.mxu0 0.0
    %710 = vmatprep.subr.mxu0 0.0
    %711 = vmatpush1.msra.mxu0 0.0
    %712 = vmatprep.subr.mxu0 0.0
    %713 = vmatpush1.msra.mxu0 0.0
    %714 = vmatprep.subr.mxu0 0.0
    %715 = vmatpush1.msra.mxu0 0.0
    %716 = vmatprep.subr.mxu0 0.0
    %717 = vmatpush1.msra.mxu0 0.0
    %718 = vmatprep.subr.mxu0 0.0
    %719 = vmatpush1.msra.mxu0 0.0
    %720 = vmatprep.subr.mxu0 0.0
    %721 = vmatpush1.msra.mxu0 0.0
    %722 = vmatprep.mubr.f32.mxu0 0.0
    %723 = vmatmul.mubr.f32.gmra.mrb[0].mxu0 %v635
    %v724 = vpop.f32.mrb[0].mxu0
    %v725 = vadd.f32 0.0, %v724
    %v726 = vpop.f32.mrb[0].mxu0
    %727 = vmatprep.mubr.f32.mxu0 0.0
    %728 = vmatmul.mubr.f32.gmra.mrb[0].mxu0 %v638
    %v729 = vpop.f32.mrb[0].mxu0
    %v730 = vadd.f32 0.0, %v729
    %v731 = vpop.f32.mrb[0].mxu0
    %732 = vmatprep.mubr.f32.mxu0 0.0
    %733 = vmatmul.mubr.f32.gmra.mrb[0].mxu0 %v641
    %v734 = vpop.f32.mrb[0].mxu0
    %v735 = vadd.f32 0.0, %v734
    %v736 = vpop.f32.mrb[0].mxu0
    %737 = vmatprep.mubr.f32.mxu0 0.0
    %738 = vmatmul.mubr.f32.gmra.mrb[0].mxu0 %v644
    %v739 = vpop.f32.mrb[0].mxu0
    %v740 = vadd.f32 0.0, %v739
    %v741 = vpop.f32.mrb[0].mxu0
    %742 = vmatprep.mubr.f32.mxu0 0.0
    %743 = vmatmul.mubr.f32.gmra.mrb[0].mxu0 %v647
    %v744 = vpop.f32.mrb[0].mxu0
    %v745 = vadd.f32 0.0, %v744
    %v746 = vpop.f32.mrb[0].mxu0
    %747 = vmatprep.mubr.f32.mxu0 0.0
    %748 = vmatmul.mubr.f32.gmra.mrb[0].mxu0 %v650
    %v749 = vpop.f32.mrb[0].mxu0
    %v750 = vadd.f32 0.0, %v749
    %v751 = vpop.f32.mrb[0].mxu0
    %752 = vmatprep.mubr.f32.mxu0 0.0
    %753 = vmatmul.mubr.f32.gmra.mrb[0].mxu0 %v653
    %v754 = vpop.f32.mrb[0].mxu0
    %v755 = vadd.f32 0.0, %v754
    %v756 = vpop.f32.mrb[0].mxu0
    %757 = vmatprep.mubr.f32.mxu0 0.0
    %758 = vmatmul.mubr.f32.gmra.mrb[0].mxu0 %v656
    %v759 = vpop.f32.mrb[0].mxu0
    %v760 = vadd.f32 0.0, %v759
    %v761 = vpop.f32.mrb[0].mxu0
    %762 = vdwg.mxu0
    %763 = vxpose.xlu0.b32.start [1/16] %v725, 128
    %764 = vxpose.xlu0.b32.cont [2/16] 0.0, 128
    %765 = vxpose.xlu0.b32.cont [3/16] 0.0, 128
    %766 = vxpose.xlu0.b32.cont [4/16] 0.0, 128
    %767 = vxpose.xlu0.b32.cont [5/16] 0.0, 128
    %768 = vxpose.xlu0.b32.cont [6/16] 0.0, 128
    %769 = vxpose.xlu0.b32.cont [7/16] 0.0, 128
    %770 = vxpose.xlu0.b32.cont [8/16] 0.0, 128
    %771 = vxpose.xlu0.b32.cont [9/16] 0.0, 128
    %772 = vxpose.xlu0.b32.cont [10/16] 0.0, 128
    %773 = vxpose.xlu0.b32.cont [11/16] 0.0, 128
    %774 = vxpose.xlu0.b32.cont [12/16] 0.0, 128
    %775 = vxpose.xlu0.b32.cont [13/16] 0.0, 128
    %776 = vxpose.xlu0.b32.cont [14/16] 0.0, 128
    %777 = vxpose.xlu0.b32.cont [15/16] 0.0, 128
    %778 = vxpose.xlu0.b32.end [16/16] 0.0, 128
    %v779 = vpop.trf.xlu0
    %v780 = vpop.trf.xlu0
    %v781 = vpop.trf.xlu0
    %v782 = vpop.trf.xlu0
    %v783 = vpop.trf.xlu0
    %v784 = vpop.trf.xlu0
    %v785 = vpop.trf.xlu0
    %v786 = vpop.trf.xlu0
    %v787 = vpop.trf.xlu0
    %v788 = vpop.trf.xlu0
    %v789 = vpop.trf.xlu0
    %v790 = vpop.trf.xlu0
    %v791 = vpop.trf.xlu0
    %v792 = vpop.trf.xlu0
    %v793 = vpop.trf.xlu0
    %v794 = vpop.trf.xlu0
    %795 = vxpose.xlu0.b32.start [1/16] %v730, 128
    %796 = vxpose.xlu0.b32.cont [2/16] 0.0, 128
    %797 = vxpose.xlu0.b32.cont [3/16] 0.0, 128
    %798 = vxpose.xlu0.b32.cont [4/16] 0.0, 128
    %799 = vxpose.xlu0.b32.cont [5/16] 0.0, 128
    %800 = vxpose.xlu0.b32.cont [6/16] 0.0, 128
    %801 = vxpose.xlu0.b32.cont [7/16] 0.0, 128
    %802 = vxpose.xlu0.b32.cont [8/16] 0.0, 128
    %803 = vxpose.xlu0.b32.cont [9/16] 0.0, 128
    %804 = vxpose.xlu0.b32.cont [10/16] 0.0, 128
    %805 = vxpose.xlu0.b32.cont [11/16] 0.0, 128
    %806 = vxpose.xlu0.b32.cont [12/16] 0.0, 128
    %807 = vxpose.xlu0.b32.cont [13/16] 0.0, 128
    %808 = vxpose.xlu0.b32.cont [14/16] 0.0, 128
    %809 = vxpose.xlu0.b32.cont [15/16] 0.0, 128
    %810 = vxpose.xlu0.b32.end [16/16] 0.0, 128
    %v811 = vpop.trf.xlu0
    %v812 = vpop.trf.xlu0
    %v813 = vpop.trf.xlu0
    %v814 = vpop.trf.xlu0
    %v815 = vpop.trf.xlu0
    %v816 = vpop.trf.xlu0
    %v817 = vpop.trf.xlu0
    %v818 = vpop.trf.xlu0
    %v819 = vpop.trf.xlu0
    %v820 = vpop.trf.xlu0
    %v821 = vpop.trf.xlu0
    %v822 = vpop.trf.xlu0
    %v823 = vpop.trf.xlu0
    %v824 = vpop.trf.xlu0
    %v825 = vpop.trf.xlu0
    %v826 = vpop.trf.xlu0
    %827 = vxpose.xlu0.b32.start [1/16] %v735, 128
    %828 = vxpose.xlu0.b32.cont [2/16] 0.0, 128
    %829 = vxpose.xlu0.b32.cont [3/16] 0.0, 128
    %830 = vxpose.xlu0.b32.cont [4/16] 0.0, 128
    %831 = vxpose.xlu0.b32.cont [5/16] 0.0, 128
    %832 = vxpose.xlu0.b32.cont [6/16] 0.0, 128
    %833 = vxpose.xlu0.b32.cont [7/16] 0.0, 128
    %834 = vxpose.xlu0.b32.cont [8/16] 0.0, 128
    %835 = vxpose.xlu0.b32.cont [9/16] 0.0, 128
    %836 = vxpose.xlu0.b32.cont [10/16] 0.0, 128
    %837 = vxpose.xlu0.b32.cont [11/16] 0.0, 128
    %838 = vxpose.xlu0.b32.cont [12/16] 0.0, 128
    %839 = vxpose.xlu0.b32.cont [13/16] 0.0, 128
    %840 = vxpose.xlu0.b32.cont [14/16] 0.0, 128
    %841 = vxpose.xlu0.b32.cont [15/16] 0.0, 128
    %842 = vxpose.xlu0.b32.end [16/16] 0.0, 128
    %v843 = vpop.trf.xlu0
    %v844 = vpop.trf.xlu0
    %v845 = vpop.trf.xlu0
    %v846 = vpop.trf.xlu0
    %v847 = vpop.trf.xlu0
    %v848 = vpop.trf.xlu0
    %v849 = vpop.trf.xlu0
    %v850 = vpop.trf.xlu0
    %v851 = vpop.trf.xlu0
    %v852 = vpop.trf.xlu0
    %v853 = vpop.trf.xlu0
    %v854 = vpop.trf.xlu0
    %v855 = vpop.trf.xlu0
    %v856 = vpop.trf.xlu0
    %v857 = vpop.trf.xlu0
    %v858 = vpop.trf.xlu0
    %859 = vxpose.xlu0.b32.start [1/16] %v740, 128
    %860 = vxpose.xlu0.b32.cont [2/16] 0.0, 128
    %861 = vxpose.xlu0.b32.cont [3/16] 0.0, 128
    %862 = vxpose.xlu0.b32.cont [4/16] 0.0, 128
    %863 = vxpose.xlu0.b32.cont [5/16] 0.0, 128
    %864 = vxpose.xlu0.b32.cont [6/16] 0.0, 128
    %865 = vxpose.xlu0.b32.cont [7/16] 0.0, 128
    %866 = vxpose.xlu0.b32.cont [8/16] 0.0, 128
    %867 = vxpose.xlu0.b32.cont [9/16] 0.0, 128
    %868 = vxpose.xlu0.b32.cont [10/16] 0.0, 128
    %869 = vxpose.xlu0.b32.cont [11/16] 0.0, 128
    %870 = vxpose.xlu0.b32.cont [12/16] 0.0, 128
    %871 = vxpose.xlu0.b32.cont [13/16] 0.0, 128
    %872 = vxpose.xlu0.b32.cont [14/16] 0.0, 128
    %873 = vxpose.xlu0.b32.cont [15/16] 0.0, 128
    %874 = vxpose.xlu0.b32.end [16/16] 0.0, 128
    %v875 = vpop.trf.xlu0
    %v876 = vpop.trf.xlu0
    %v877 = vpop.trf.xlu0
    %v878 = vpop.trf.xlu0
    %v879 = vpop.trf.xlu0
    %v880 = vpop.trf.xlu0
    %v881 = vpop.trf.xlu0
    %v882 = vpop.trf.xlu0
    %v883 = vpop.trf.xlu0
    %v884 = vpop.trf.xlu0
    %v885 = vpop.trf.xlu0
    %v886 = vpop.trf.xlu0
    %v887 = vpop.trf.xlu0
    %v888 = vpop.trf.xlu0
    %v889 = vpop.trf.xlu0
    %v890 = vpop.trf.xlu0
    %891 = vxpose.xlu0.b32.start [1/16] %v745, 128
    %892 = vxpose.xlu0.b32.cont [2/16] 0.0, 128
    %893 = vxpose.xlu0.b32.cont [3/16] 0.0, 128
    %894 = vxpose.xlu0.b32.cont [4/16] 0.0, 128
    %895 = vxpose.xlu0.b32.cont [5/16] 0.0, 128
    %896 = vxpose.xlu0.b32.cont [6/16] 0.0, 128
    %897 = vxpose.xlu0.b32.cont [7/16] 0.0, 128
    %898 = vxpose.xlu0.b32.cont [8/16] 0.0, 128
    %899 = vxpose.xlu0.b32.cont [9/16] 0.0, 128
    %900 = vxpose.xlu0.b32.cont [10/16] 0.0, 128
    %901 = vxpose.xlu0.b32.cont [11/16] 0.0, 128
    %902 = vxpose.xlu0.b32.cont [12/16] 0.0, 128
    %903 = vxpose.xlu0.b32.cont [13/16] 0.0, 128
    %904 = vxpose.xlu0.b32.cont [14/16] 0.0, 128
    %905 = vxpose.xlu0.b32.cont [15/16] 0.0, 128
    %906 = vxpose.xlu0.b32.end [16/16] 0.0, 128
    %v907 = vpop.trf.xlu0
    %v908 = vpop.trf.xlu0
    %v909 = vpop.trf.xlu0
    %v910 = vpop.trf.xlu0
    %v911 = vpop.trf.xlu0
    %v912 = vpop.trf.xlu0
    %v913 = vpop.trf.xlu0
    %v914 = vpop.trf.xlu0
    %v915 = vpop.trf.xlu0
    %v916 = vpop.trf.xlu0
    %v917 = vpop.trf.xlu0
    %v918 = vpop.trf.xlu0
    %v919 = vpop.trf.xlu0
    %v920 = vpop.trf.xlu0
    %v921 = vpop.trf.xlu0
    %v922 = vpop.trf.xlu0
    %923 = vxpose.xlu0.b32.start [1/16] %v750, 128
    %924 = vxpose.xlu0.b32.cont [2/16] 0.0, 128
    %925 = vxpose.xlu0.b32.cont [3/16] 0.0, 128
    %926 = vxpose.xlu0.b32.cont [4/16] 0.0, 128
    %927 = vxpose.xlu0.b32.cont [5/16] 0.0, 128
    %928 = vxpose.xlu0.b32.cont [6/16] 0.0, 128
    %929 = vxpose.xlu0.b32.cont [7/16] 0.0, 128
    %930 = vxpose.xlu0.b32.cont [8/16] 0.0, 128
    %931 = vxpose.xlu0.b32.cont [9/16] 0.0, 128
    %932 = vxpose.xlu0.b32.cont [10/16] 0.0, 128
    %933 = vxpose.xlu0.b32.cont [11/16] 0.0, 128
    %934 = vxpose.xlu0.b32.cont [12/16] 0.0, 128
    %935 = vxpose.xlu0.b32.cont [13/16] 0.0, 128
    %936 = vxpose.xlu0.b32.cont [14/16] 0.0, 128
    %937 = vxpose.xlu0.b32.cont [15/16] 0.0, 128
    %938 = vxpose.xlu0.b32.end [16/16] 0.0, 128
    %v939 = vpop.trf.xlu0
    %v940 = vpop.trf.xlu0
    %v941 = vpop.trf.xlu0
    %v942 = vpop.trf.xlu0
    %v943 = vpop.trf.xlu0
    %v944 = vpop.trf.xlu0
    %v945 = vpop.trf.xlu0
    %v946 = vpop.trf.xlu0
    %v947 = vpop.trf.xlu0
    %v948 = vpop.trf.xlu0
    %v949 = vpop.trf.xlu0
    %v950 = vpop.trf.xlu0
    %v951 = vpop.trf.xlu0
    %v952 = vpop.trf.xlu0
    %v953 = vpop.trf.xlu0
    %v954 = vpop.trf.xlu0
    %955 = vxpose.xlu0.b32.start [1/16] %v755, 128
    %956 = vxpose.xlu0.b32.cont [2/16] 0.0, 128
    %957 = vxpose.xlu0.b32.cont [3/16] 0.0, 128
    %958 = vxpose.xlu0.b32.cont [4/16] 0.0, 128
    %959 = vxpose.xlu0.b32.cont [5/16] 0.0, 128
    %960 = vxpose.xlu0.b32.cont [6/16] 0.0, 128
    %961 = vxpose.xlu0.b32.cont [7/16] 0.0, 128
    %962 = vxpose.xlu0.b32.cont [8/16] 0.0, 128
    %963 = vxpose.xlu0.b32.cont [9/16] 0.0, 128
    %964 = vxpose.xlu0.b32.cont [10/16] 0.0, 128
    %965 = vxpose.xlu0.b32.cont [11/16] 0.0, 128
    %966 = vxpose.xlu0.b32.cont [12/16] 0.0, 128
    %967 = vxpose.xlu0.b32.cont [13/16] 0.0, 128
    %968 = vxpose.xlu0.b32.cont [14/16] 0.0, 128
    %969 = vxpose.xlu0.b32.cont [15/16] 0.0, 128
    %970 = vxpose.xlu0.b32.end [16/16] 0.0, 128
    %v971 = vpop.trf.xlu0
    %v972 = vpop.trf.xlu0
    %v973 = vpop.trf.xlu0
    %v974 = vpop.trf.xlu0
    %v975 = vpop.trf.xlu0
    %v976 = vpop.trf.xlu0
    %v977 = vpop.trf.xlu0
    %v978 = vpop.trf.xlu0
    %v979 = vpop.trf.xlu0
    %v980 = vpop.trf.xlu0
    %v981 = vpop.trf.xlu0
    %v982 = vpop.trf.xlu0
    %v983 = vpop.trf.xlu0
    %v984 = vpop.trf.xlu0
    %v985 = vpop.trf.xlu0
    %v986 = vpop.trf.xlu0
    %987 = vxpose.xlu0.b32.start [1/16] %v760, 128
    %988 = vxpose.xlu0.b32.cont [2/16] 0.0, 128
    %989 = vxpose.xlu0.b32.cont [3/16] 0.0, 128
    %990 = vxpose.xlu0.b32.cont [4/16] 0.0, 128
    %991 = vxpose.xlu0.b32.cont [5/16] 0.0, 128
    %992 = vxpose.xlu0.b32.cont [6/16] 0.0, 128
    %993 = vxpose.xlu0.b32.cont [7/16] 0.0, 128
    %994 = vxpose.xlu0.b32.cont [8/16] 0.0, 128
    %995 = vxpose.xlu0.b32.cont [9/16] 0.0, 128
    %996 = vxpose.xlu0.b32.cont [10/16] 0.0, 128
    %997 = vxpose.xlu0.b32.cont [11/16] 0.0, 128
    %998 = vxpose.xlu0.b32.cont [12/16] 0.0, 128
    %999 = vxpose.xlu0.b32.cont [13/16] 0.0, 128
    %1000 = vxpose.xlu0.b32.cont [14/16] 0.0, 128
    %1001 = vxpose.xlu0.b32.cont [15/16] 0.0, 128
    %1002 = vxpose.xlu0.b32.end [16/16] 0.0, 128
    %v1003 = vpop.trf.xlu0
    %v1004 = vpop.trf.xlu0
    %v1005 = vpop.trf.xlu0
    %v1006 = vpop.trf.xlu0
    %v1007 = vpop.trf.xlu0
    %v1008 = vpop.trf.xlu0
    %v1009 = vpop.trf.xlu0
    %v1010 = vpop.trf.xlu0
    %v1011 = vpop.trf.xlu0
    %v1012 = vpop.trf.xlu0
    %v1013 = vpop.trf.xlu0
    %v1014 = vpop.trf.xlu0
    %v1015 = vpop.trf.xlu0
    %v1016 = vpop.trf.xlu0
    %v1017 = vpop.trf.xlu0
    %v1018 = vpop.trf.xlu0
    %v1020 = vsel %vm633, %v779, 0
    %v1023 = vsel %vm633, %v811, 0
    %v1026 = vsel %vm633, %v843, 0
    %v1029 = vsel %vm633, %v875, 0
    %v1032 = vsel %vm633, %v907, 0
    %v1035 = vsel %vm633, %v939, 0
    %v1038 = vsel %vm633, %v971, 0
    %v1041 = vsel %vm633, %v1003, 0
    %1043 = vmatprep.subr.mxu0 0.0
    %1044 = vmatpush1.msra.mxu0 %v632
    %1045 = vmatprep.subr.mxu0 0.0
    %1046 = vmatpush1.msra.mxu0 0.0
    %1047 = vmatprep.subr.mxu0 0.0
    %1048 = vmatpush1.msra.mxu0 0.0
    %1049 = vmatprep.subr.mxu0 0.0
    %1050 = vmatpush1.msra.mxu0 0.0
    %1051 = vmatprep.subr.mxu0 0.0
    %1052 = vmatpush1.msra.mxu0 0.0
    %1053 = vmatprep.subr.mxu0 0.0
    %1054 = vmatpush1.msra.mxu0 0.0
    %1055 = vmatprep.subr.mxu0 0.0
    %1056 = vmatpush1.msra.mxu0 0.0
    %1057 = vmatprep.subr.mxu0 0.0
    %1058 = vmatpush1.msra.mxu0 0.0
    %1059 = vmatprep.subr.mxu0 0.0
    %1060 = vmatpush1.msra.mxu0 0.0
    %1061 = vmatprep.subr.mxu0 0.0
    %1062 = vmatpush1.msra.mxu0 0.0
    %1063 = vmatprep.subr.mxu0 0.0
    %1064 = vmatpush1.msra.mxu0 0.0
    %1065 = vmatprep.subr.mxu0 0.0
    %1066 = vmatpush1.msra.mxu0 0.0
    %1067 = vmatprep.subr.mxu0 0.0
    %1068 = vmatpush1.msra.mxu0 0.0
    %1069 = vmatprep.subr.mxu0 0.0
    %1070 = vmatpush1.msra.mxu0 0.0
    %1071 = vmatprep.subr.mxu0 0.0
    %1072 = vmatpush1.msra.mxu0 0.0
    %1073 = vmatprep.subr.mxu0 0.0
    %1074 = vmatpush1.msra.mxu0 0.0
    %1075 = vmatprep.subr.mxu0 0.0
    %1076 = vmatpush1.msra.mxu0 0.0
    %1077 = vmatprep.subr.mxu0 0.0
    %1078 = vmatpush1.msra.mxu0 0.0
    %1079 = vmatprep.subr.mxu0 0.0
    %1080 = vmatpush1.msra.mxu0 0.0
    %1081 = vmatprep.subr.mxu0 0.0
    %1082 = vmatpush1.msra.mxu0 0.0
    %1083 = vmatprep.subr.mxu0 0.0
    %1084 = vmatpush1.msra.mxu0 0.0
    %1085 = vmatprep.subr.mxu0 0.0
    %1086 = vmatpush1.msra.mxu0 0.0
    %1087 = vmatprep.subr.mxu0 0.0
    %1088 = vmatpush1.msra.mxu0 0.0
    %1089 = vmatprep.subr.mxu0 0.0
    %1090 = vmatpush1.msra.mxu0 0.0
    %1091 = vmatprep.subr.mxu0 0.0
    %1092 = vmatpush1.msra.mxu0 0.0
    %1093 = vmatprep.subr.mxu0 0.0
    %1094 = vmatpush1.msra.mxu0 0.0
    %1095 = vmatprep.subr.mxu0 0.0
    %1096 = vmatpush1.msra.mxu0 0.0
    %1097 = vmatprep.subr.mxu0 0.0
    %1098 = vmatpush1.msra.mxu0 0.0
    %1099 = vmatprep.subr.mxu0 0.0
    %1100 = vmatpush1.msra.mxu0 0.0
    %1101 = vmatprep.subr.mxu0 0.0
    %1102 = vmatpush1.msra.mxu0 0.0
    %1103 = vmatprep.subr.mxu0 0.0
    %1104 = vmatpush1.msra.mxu0 0.0
    %1105 = vmatprep.subr.mxu0 0.0
    %1106 = vmatpush1.msra.mxu0 0.0
    %1107 = vmatprep.mubr.f32.mxu0 0.0
    %1108 = vmatmul.mubr.f32.gmra.mrb[0].mxu0 %v1020
    %v1109 = vpop.f32.mrb[0].mxu0
    %v1110 = vadd.f32 0.0, %v1109
    %v1111 = vpop.f32.mrb[0].mxu0
    %1112 = vmatprep.mubr.f32.mxu0 0.0
    %1113 = vmatmul.mubr.f32.gmra.mrb[0].mxu0 %v1023
    %v1114 = vpop.f32.mrb[0].mxu0
    %v1115 = vadd.f32 0.0, %v1114
    %v1116 = vpop.f32.mrb[0].mxu0
    %1117 = vmatprep.mubr.f32.mxu0 0.0
    %1118 = vmatmul.mubr.f32.gmra.mrb[0].mxu0 %v1026
    %v1119 = vpop.f32.mrb[0].mxu0
    %v1120 = vadd.f32 0.0, %v1119
    %v1121 = vpop.f32.mrb[0].mxu0
    %1122 = vmatprep.mubr.f32.mxu0 0.0
    %1123 = vmatmul.mubr.f32.gmra.mrb[0].mxu0 %v1029
    %v1124 = vpop.f32.mrb[0].mxu0
    %v1125 = vadd.f32 0.0, %v1124
    %v1126 = vpop.f32.mrb[0].mxu0
    %1127 = vmatprep.mubr.f32.mxu0 0.0
    %1128 = vmatmul.mubr.f32.gmra.mrb[0].mxu0 %v1032
    %v1129 = vpop.f32.mrb[0].mxu0
    %v1130 = vadd.f32 0.0, %v1129
    %v1131 = vpop.f32.mrb[0].mxu0
    %1132 = vmatprep.mubr.f32.mxu0 0.0
    %1133 = vmatmul.mubr.f32.gmra.mrb[0].mxu0 %v1035
    %v1134 = vpop.f32.mrb[0].mxu0
    %v1135 = vadd.f32 0.0, %v1134
    %v1136 = vpop.f32.mrb[0].mxu0
    %1137 = vmatprep.mubr.f32.mxu0 0.0
    %1138 = vmatmul.mubr.f32.gmra.mrb[0].mxu0 %v1038
    %v1139 = vpop.f32.mrb[0].mxu0
    %v1140 = vadd.f32 0.0, %v1139
    %v1141 = vpop.f32.mrb[0].mxu0
    %1142 = vmatprep.mubr.f32.mxu0 0.0
    %1143 = vmatmul.mubr.f32.gmra.mrb[0].mxu0 %v1041
    %v1144 = vpop.f32.mrb[0].mxu0
    %v1145 = vadd.f32 0.0, %v1144
    %v1146 = vpop.f32.mrb[0].mxu0
    %1147 = vdwg.mxu0
    %v1148 = vsub.f32 %v585, %v1110
    %v1149 = vsub.f32 %v590, %v1115
    %v1150 = vsub.f32 %v595, %v1120
    %v1151 = vsub.f32 %v600, %v1125
    %v1152 = vsub.f32 %v605, %v1130
    %v1153 = vsub.f32 %v610, %v1135
    %v1154 = vsub.f32 %v615, %v1140
    %v1155 = vsub.f32 %v620, %v1145
    %v1156 = vmul.f32 %v1148, %v1148
    %v1157 = vmul.f32 %v1149, %v1149
    %v1158 = vmul.f32 %v1150, %v1150
    %v1159 = vmul.f32 %v1151, %v1151
    %v1160 = vmul.f32 %v1152, %v1152
    %v1161 = vmul.f32 %v1153, %v1153
    %v1162 = vmul.f32 %v1154, %v1154
    %v1163 = vmul.f32 %v1155, %v1155
    %vm1164 = vcmask 31744
    %v1165 = vsel %vm1164, %v1156, 0.0
    %v1166 = vsel %vm1164, %v1157, 0.0
    %v1167 = vadd.f32 %v1165, %v1166
    %v1168 = vsel %vm1164, %v1158, 0.0
    %v1169 = vadd.f32 %v1167, %v1168
    %v1170 = vsel %vm1164, %v1159, 0.0
    %v1171 = vadd.f32 %v1169, %v1170
    %v1172 = vsel %vm1164, %v1160, 0.0
    %v1173 = vadd.f32 %v1171, %v1172
    %v1174 = vsel %vm1164, %v1161, 0.0
    %v1175 = vadd.f32 %v1173, %v1174
    %v1176 = vsel %vm1164, %v1162, 0.0
    %v1177 = vadd.f32 %v1175, %v1176
    %v1178 = vsel %vm1164, %v1163, 0.0
    %v1179 = vadd.f32 %v1177, %v1178
    %v1180 = vrot.slane %v1179, 4
    %v1181 = vadd.f32 %v1179, %v1180
    %v1182 = vrot.slane %v1181, 2
    %v1183 = vadd.f32 %v1181, %v1182
    %v1184 = vrot.slane %v1183, 1
    %v1185 = vadd.f32 %v1183, %v1184
    %vm1186 = vcmask 24576
    %1187 = vst.msk [vmem:[#allocation2] sm:$0x1] %vm1186, %v1185
    // Predicated region
    $region26: #{tpu_custom_call.1} parent=1 // pred_check
      _
    $region27: #{tpu_custom_call.1} parent=1 // pred_check_branch
      %1189 = sbr.rel (0) target = $region29
    $region28: #{tpu_custom_call.1} parent=1 // pred_region
      %s1191 = ssub.s32 16, 16
      %1192 = vsyncadd [#allocation3], %s1191
      %s1194 = sshll.u32 [#allocation2], 4
      %s1195 = int_to_ptr.vmem [resolvable:$true] %s1194
      %1197 = dma.vmem_to_hbm [thread:$0]  %s1195, 16, %s6, [#allocation3]
    $region29: #{tpu_custom_call.1} parent=1 // pred_fallthru
      _
    // Predicated region
    $region30: #{tpu_custom_call.1} parent=1 // pred_check
      _
    $region31: #{tpu_custom_call.1} parent=1 // pred_check_branch
      %1199 = sbr.rel (0) target = $region33
    $region32: #{tpu_custom_call.1} parent=1 // pred_region
      %1200 = dma.done [#allocation3], 16
    $region33: #{tpu_custom_call.1} parent=1 // pred_fallthru
      _
    %1201 = vsyncpa [#allocation3], 1

</llo_original>
